<compile_context>
chip_gen: v6e
topology: v6e:2x2x1
jax: 0.10.0
libtpu: 0.0.40
codegen_flags: <defaults>
</compile_context>

<pallas_src>
import functools

import jax
import jax.numpy as jnp
from jax.experimental import pallas as pl
from jax.experimental.pallas import tpu as pltpu


# -----------------------------------------------------------------------------
# helpers
# -----------------------------------------------------------------------------
def _round_up(x, m):
    return ((x + m - 1) // m) * m


def _pad_to(a, shape):
    pads = [(0, s - d) for d, s in zip(a.shape, shape)]
    if any(p[1] for p in pads):
        a = jnp.pad(a, pads)
    return a


def _pick_tiles(B, K, N, max_tk=512, max_tn=512):
    """(8,128)-aligned tile sizes that double-buffer safely on v5e/v6e/v7x."""
    b_pad = _round_up(max(B, 1), 8)
    tk = min(max_tk, _round_up(K, 128))
    k_pad = _round_up(K, tk)
    tn = min(max_tn, _round_up(N, 128))
    n_pad = _round_up(N, tn)
    return b_pad, tk, k_pad, tn, n_pad


def _vmem_limit_bytes(b_pad, tk, tn, in_bytes, out_bytes):
    est = (2 * b_pad * tk * in_bytes      # x tile, double buffered
           + 2 * tk * tn * in_bytes       # weight tile, double buffered
           + 2 * tn * in_bytes            # bias tile
           + 2 * b_pad * tn * out_bytes   # output tile
           + b_pad * tn * 4)              # f32 accumulator
    # never request below the default 32 MiB, never above v7x's 64 MiB phys.
    return int(min(64 * 2**20, max(32 * 2**20, 2 * est)))


def _make_linear_kernel(k_axis):
    """Tiled y = x @ w + b with f32 accumulation; bias folded into acc init."""
    def kernel(x_ref, w_ref, b_ref, o_ref, acc_ref):
        k = pl.program_id(k_axis)

        @pl.when(k == 0)
        def _init():
            acc_ref[...] = jnp.broadcast_to(
                b_ref[...].astype(jnp.float32), acc_ref.shape)

        acc_ref[...] += jnp.dot(x_ref[...], w_ref[...],
                                preferred_element_type=jnp.float32)

        @pl.when(k == pl.num_programs(k_axis) - 1)
        def _done():
            o_ref[...] = acc_ref[...].astype(o_ref.dtype)

    return kernel


# -----------------------------------------------------------------------------
# fused path: shared features, concatenate_dim == 1  ->  one wide matmul
# -----------------------------------------------------------------------------
@jax.jit
def _fused_shared_linear(x, w_big, b_big):
    """x: (B, K); w_big: (K, N) with per-head columns contiguous; b_big: (N,)."""
    B, K = x.shape
    N = w_big.shape[1]
    b_pad, tk, k_pad, tn, n_pad = _pick_tiles(B, K, N)

    xp = _pad_to(x, (b_pad, k_pad))
    wp = _pad_to(w_big, (k_pad, n_pad))
    bp = _pad_to(b_big.reshape(1, N), (1, n_pad))

    out = pl.pallas_call(
        _make_linear_kernel(k_axis=1),
        out_shape=jax.ShapeDtypeStruct((b_pad, n_pad), x.dtype),
        grid_spec=pltpu.PrefetchScalarGridSpec(
            num_scalar_prefetch=0,
            grid=(n_pad // tn, k_pad // tk),
            in_specs=[
                pl.BlockSpec((b_pad, tk), lambda n, k: (0, k)),   # x: resident
                pl.BlockSpec((tk, tn), lambda n, k: (k, n)),      # W_big tile
                pl.BlockSpec((1, tn), lambda n, k: (0, n)),       # bias tile
            ],
            out_specs=pl.BlockSpec((b_pad, tn), lambda n, k: (0, n)),
            scratch_shapes=[pltpu.VMEM((b_pad, tn), jnp.float32)],
        ),
        compiler_params=pltpu.CompilerParams(
            dimension_semantics=("parallel", "arbitrary"),
            vmem_limit_bytes=_vmem_limit_bytes(
                b_pad, tk, tn, x.dtype.itemsize, x.dtype.itemsize)),
    )(xp, wp, bp)
    return out[:B, :N]


# -----------------------------------------------------------------------------
# per-head path: list of per-head features, or concatenate_dim == 0 / none
# -----------------------------------------------------------------------------
@functools.partial(jax.jit, static_argnames=("concat_dim1",))
def _per_head_linear(x, weights, biases, concat_dim1):
    """x: (B, K) shared or (H, B, K); weights: (H, K, D); biases: (H, D)."""
    H, K, D = weights.shape
    shared = (x.ndim == 2)
    B = x.shape[0] if shared else x.shape[1]
    b_pad, tk, k_pad, tn, d_pad = _pick_tiles(B, K, D)
    n_blocks = d_pad // tn
    k_blocks = k_pad // tk

    wp = _pad_to(weights, (H, k_pad, d_pad))
    bp = _pad_to(biases.reshape(H, 1, D), (H, 1, d_pad))
    if shared:
        # shared x: constant block index -> stays resident, no H copies in HBM.
        xp = _pad_to(x, (b_pad, k_pad))
        x_spec = pl.BlockSpec((b_pad, tk), lambda h, n, k: (0, k))
    else:
        xp = _pad_to(x, (H, b_pad, k_pad))
        x_spec = pl.BlockSpec((pl.Squeezed(), b_pad, tk),
                              lambda h, n, k: (h, 0, k))

    w_spec = pl.BlockSpec((pl.Squeezed(), tk, tn), lambda h, n, k: (h, k, n))
    b_spec = pl.BlockSpec((pl.Squeezed(), 1, tn), lambda h, n, k: (h, 0, n))

    if concat_dim1:
        out_padded_shape = (b_pad, H * d_pad)
        out_spec = pl.BlockSpec((b_pad, tn),
                                lambda h, n, k: (0, h * n_blocks + n))
    else:
        out_padded_shape = (H * b_pad, d_pad)
        out_spec = pl.BlockSpec((b_pad, tn), lambda h, n, k: (h, n))

    out = pl.pallas_call(
        _make_linear_kernel(k_axis=2),
        out_shape=jax.ShapeDtypeStruct(out_padded_shape, x.dtype),
        grid_spec=pltpu.PrefetchScalarGridSpec(
            num_scalar_prefetch=0,
            grid=(H, n_blocks, k_blocks),
            in_specs=[x_spec, w_spec, b_spec],
            out_specs=out_spec,
            scratch_shapes=[pltpu.VMEM((b_pad, tn), jnp.float32)],
        ),
        compiler_params=pltpu.CompilerParams(
            dimension_semantics=("parallel", "parallel", "arbitrary"),
            vmem_limit_bytes=_vmem_limit_bytes(
                b_pad, tk, tn, x.dtype.itemsize, x.dtype.itemsize)),
    )(xp, wp, bp)

    if concat_dim1:
        out = out.reshape(b_pad, H, d_pad)[:B, :, :D]   # strip padding
        return out.reshape(B, H * D)                    # == concat along dim 1
    return out.reshape(H, b_pad, d_pad)[:, :B, :D]      # (H, B, D)


# -----------------------------------------------------------------------------
# module-like wrapper
# -----------------------------------------------------------------------------
class ParallelHeadLinear:
    """Pallas port of ParallelHead with Linear heads.

    weights_torch: (H, D_out, D_in) as stored by torch.nn.Linear.
    biases:        (H, D_out).
    """

    def __init__(self, weights_torch, biases, concatenate_dim=1, out_shape=None):
        H, D_out, D_in = weights_torch.shape
        self.num_parallel_head = H
        self.d_in, self.d_out = D_in, D_out
        self.concatenate_dim = concatenate_dim
        self.out_shape = out_shape
        # (H, D_in, D_out) for the per-head kernel.
        self.weights = jnp.transpose(weights_torch, (0, 2, 1))
        self.biases = biases.reshape(H, D_out)
        # Fused (D_in, H*D_out) layout packed ONCE here, so the shared-features
        # path is a single wide matmul and the dim-1 concat is the column layout.
        self.w_fused = jnp.transpose(self.weights, (1, 0, 2)).reshape(
            D_in, H * D_out)
        self.b_fused = self.biases.reshape(H * D_out)

    def __call__(self, features):
        H = self.num_parallel_head
        if isinstance(features, (list, tuple)):
            assert len(features) == H
            x = jnp.stack(list(features), axis=0)          # (H, B, D_in)
            shared = False
        elif features.ndim == 3:
            x = features                                   # (H, B, D_in)
            shared = False
        else:
            x = features                                   # (B, D_in)
            shared = True

        cdim = self.concatenate_dim
        if cdim is None or cdim < 0:
            # torch module returns the list of per-head outputs in this case.
            per_head = _per_head_linear(x, self.weights, self.biases,
                                        concat_dim1=False)     # (H, B, D_out)
            return [per_head[h] for h in range(H)]

        if cdim == 1:
            if shared:
                out = _fused_shared_linear(x, self.w_fused, self.b_fused)
            else:
                out = _per_head_linear(x, self.weights, self.biases,
                                       concat_dim1=True)
        elif cdim == 0:
            per_head = _per_head_linear(x, self.weights, self.biases,
                                        concat_dim1=False)     # (H, B, D_out)
            out = per_head.reshape(H * per_head.shape[1], self.d_out)
        else:
            # TODO(synk): concatenate_dim > 1 requires >2-D head outputs; Linear
            # heads only produce 2-D, so only dims {0, 1} (or negative) apply.
            raise NotImplementedError("concatenate_dim must be 0, 1 or negative")

        if self.out_shape is not None:
            out = out.reshape(self.out_shape)
        return out


# -----------------------------------------------------------------------------
# pure-JAX reference
# -----------------------------------------------------------------------------
def parallel_head_reference(features, weights_torch, biases,
                            concatenate_dim=1, out_shape=None):
    H = weights_torch.shape[0]
    if isinstance(features, (list, tuple)):
        feats = list(features)
    elif features.ndim == 3:
        feats = [features[h] for h in range(H)]
    else:
        feats = [features] * H
    outs = [jnp.einsum("bi,oi->bo", feats[h], weights_torch[h],
                       precision=jax.lax.Precision.HIGHEST) + biases[h]
            for h in range(H)]
    if concatenate_dim is None or concatenate_dim < 0:
        return outs
    out = jnp.concatenate(outs, axis=concatenate_dim)
    if out_shape is not None:
        out = out.reshape(out_shape)
    return out


if __name__ == "__main__":
    H, B, D_in, D_out = 3, 8, 128, 128
    key = jax.random.PRNGKey(0)
    kw, kb, kx, kf = jax.random.split(key, 4)

    # torch.nn.Linear layout: W is (out, in).
    w_torch = jax.random.normal(kw, (H, D_out, D_in), dtype=jnp.float32) * 0.02
    b = jax.random.normal(kb, (H, D_out), dtype=jnp.float32) * 0.01

    head = ParallelHeadLinear(w_torch, b, concatenate_dim=1, out_shape=None)

    # --- shared features (the `else` branch of forward): fused wide matmul ---
    x = jax.random.normal(kx, (B, D_in), dtype=jnp.float32)
    out_shared = jax.block_until_ready(head(x))
    ref_shared = parallel_head_reference(x, w_torch, b, concatenate_dim=1)
    assert out_shared.shape == (B, H * D_out)
    assert jnp.allclose(out_shared, ref_shared, atol=1e-3, rtol=1e-3)

    # --- list of per-head features: per-head grid, concat free via out spec ---
    feats = [jax.random.normal(k, (B, D_in), dtype=jnp.float32)
             for k in jax.random.split(kf, H)]
    out_list = jax.block_until_ready(head(feats))
    ref_list = parallel_head_reference(feats, w_torch, b, concatenate_dim=1)
    assert out_list.shape == (B, H * D_out)
    assert jnp.allclose(out_list, ref_list, atol=1e-3, rtol=1e-3)

    # --- out_shape view, as in the torch module ---
    head_view = ParallelHeadLinear(w_torch, b, concatenate_dim=1,
                                   out_shape=(B, H, D_out))
    out_view = jax.block_until_ready(head_view(x))
    assert out_view.shape == (B, H, D_out)
    assert jnp.allclose(out_view.reshape(B, H * D_out), ref_shared,
                        atol=1e-3, rtol=1e-3)

    print("KERNEL_OK")
</pallas_src>

<mosaic_0001>
module attributes {stable_mosaic.version = 11 : i64} {
  func.func @kernel(%arg0: i32, %arg1: i32, %arg2: memref<8x128xf32, #tpu.memory_space<vmem>>, %arg3: memref<128x384xf32, #tpu.memory_space<vmem>>, %arg4: memref<1x384xf32, #tpu.memory_space<vmem>>, %arg5: memref<8x384xf32, #tpu.memory_space<vmem>>, %arg6: memref<8x384xf32, #tpu.memory_space<vmem>>) attributes {dimension_semantics = [#tpu.dimension_semantics<parallel>, #tpu.dimension_semantics<arbitrary>], iteration_bounds = array<i64: 1, 1>, scalar_prefetch = 0 : i64, scratch_operands = 1 : i64, tpu.core_type = #tpu.core_type<tc>, window_params = [{transform_indices = @transform_0, window_bounds = array<i64: 8, 128>}, {transform_indices = @transform_1, window_bounds = array<i64: 128, 384>}, {transform_indices = @transform_2, window_bounds = array<i64: 1, 384>}, {transform_indices = @transform_3, window_bounds = array<i64: 8, 384>}]} {
    %c0_i32 = arith.constant 0 : i32
    %0 = arith.cmpi eq, %arg1, %c0_i32 : i32
    %1 = arith.extui %0 : i1 to i32
    %c0_i32_0 = arith.constant 0 : i32
    %2 = arith.cmpi ne, %1, %c0_i32_0 : i32
    scf.if %2 {
      %c0_10 = arith.constant 0 : index
      %c0_11 = arith.constant 0 : index
      %12 = vector.load %arg4[%c0_10, %c0_11] : memref<1x384xf32, #tpu.memory_space<vmem>>, vector<1x384xf32>
      %13 = vector.shape_cast %12 : vector<1x384xf32> to vector<1x384xf32>
      %14 = vector.broadcast %13 : vector<1x384xf32> to vector<8x384xf32>
      %c0_12 = arith.constant 0 : index
      %c0_13 = arith.constant 0 : index
      %15 = vector.load %arg6[%c0_12, %c0_13] : memref<8x384xf32, #tpu.memory_space<vmem>>, vector<8x384xf32>
      tpu.vector_store %arg6[%c0_12, %c0_13], %14 {strides = array<i32>} : memref<8x384xf32, #tpu.memory_space<vmem>>, vector<8x384xf32>,
    } else {
    }
    %c0 = arith.constant 0 : index
    %c0_1 = arith.constant 0 : index
    %3 = vector.load %arg6[%c0, %c0_1] : memref<8x384xf32, #tpu.memory_space<vmem>>, vector<8x384xf32>
    %c0_2 = arith.constant 0 : index
    %c0_3 = arith.constant 0 : index
    %4 = vector.load %arg2[%c0_2, %c0_3] : memref<8x128xf32, #tpu.memory_space<vmem>>, vector<8x128xf32>
    %c0_4 = arith.constant 0 : index
    %c0_5 = arith.constant 0 : index
    %5 = vector.load %arg3[%c0_4, %c0_5] : memref<128x384xf32, #tpu.memory_space<vmem>>, vector<128x384xf32>
    %cst = arith.constant dense<0.000000e+00> : vector<8x384xf32>
    %6 = tpu.matmul %4, %5, %cst {dimension_numbers = #tpu.dot_dimension_numbers<[1], [0], [0], [1], [0, 0, 1, 1], [], []>} : vector<8x128xf32>, vector<128x384xf32>, vector<8x384xf32> -> vector<8x384xf32>
    %7 = arith.addf %3, %6 : vector<8x384xf32>
    %c0_6 = arith.constant 0 : index
    %c0_7 = arith.constant 0 : index
    %8 = vector.load %arg6[%c0_6, %c0_7] : memref<8x384xf32, #tpu.memory_space<vmem>>, vector<8x384xf32>
    tpu.vector_store %arg6[%c0_6, %c0_7], %7 {strides = array<i32>} : memref<8x384xf32, #tpu.memory_space<vmem>>, vector<8x384xf32>,
    %c0_i32_8 = arith.constant 0 : i32
    %9 = arith.cmpi eq, %arg1, %c0_i32_8 : i32
    %10 = arith.extui %9 : i1 to i32
    %c0_i32_9 = arith.constant 0 : i32
    %11 = arith.cmpi ne, %10, %c0_i32_9 : i32
    scf.if %11 {
      %c0_10 = arith.constant 0 : index
      %c0_11 = arith.constant 0 : index
      %12 = vector.load %arg6[%c0_10, %c0_11] : memref<8x384xf32, #tpu.memory_space<vmem>>, vector<8x384xf32>
      %c0_12 = arith.constant 0 : index
      %c0_13 = arith.constant 0 : index
      %13 = vector.load %arg5[%c0_12, %c0_13] : memref<8x384xf32, #tpu.memory_space<vmem>>, vector<8x384xf32>
      tpu.vector_store %arg5[%c0_12, %c0_13], %12 {strides = array<i32>} : memref<8x384xf32, #tpu.memory_space<vmem>>, vector<8x384xf32>,
    } else {
    }
    return
  }
  func.func @transform_0(%arg0: i32, %arg1: i32) -> (i32, i32) {
    %c0_i32 = arith.constant 0 : i32
    %c0_i32_0 = arith.constant 0 : i32
    return %c0_i32, %arg1 : i32, i32
  }
  func.func @transform_1(%arg0: i32, %arg1: i32) -> (i32, i32) {
    %c0_i32 = arith.constant 0 : i32
    return %arg1, %arg0 : i32, i32
  }
  func.func @transform_2(%arg0: i32, %arg1: i32) -> (i32, i32) {
    %c0_i32 = arith.constant 0 : i32
    %c0_i32_0 = arith.constant 0 : i32
    return %c0_i32, %arg0 : i32, i32
  }
  func.func @transform_3(%arg0: i32, %arg1: i32) -> (i32, i32) {
    %c0_i32 = arith.constant 0 : i32
    %c0_i32_0 = arith.constant 0 : i32
    return %c0_i32, %arg0 : i32, i32
  }
}

</mosaic_0001>

<llo_original>
// kernel: _fused_shared_linear.1
$region0: #{_fused_shared_linear.1}
  #allocation0 [shape = 'u32[]', space=smem, size = 0x4, offset = 0x4, fixed_abs, tag = 'smem constant byte address 0x4 - core index']
  #allocation1 [shape = 'u32[144,128]{1,0:T(1,128)}', space=vmem, size = 0x12000, scoped, tag = 'internal scratch']
  #allocation2 [shape = 'f32[8,384]{1,0:T(8,128)}', space=vmem, size = 0x3000, scoped, tag = 'scratch operand']
  %s0 = inlined_call_operand.hbm [shape: f32[8,128], index: 0, kind: input, shape index: {}]
  %s1 = inlined_call_operand.hbm [shape: f32[128,384], index: 1, kind: input, shape index: {}]
  %s2 = inlined_call_operand.vmem [shape: f32[1,384], index: 2, kind: input, shape index: {}]
  %s3 = inlined_call_operand.hbm [shape: f32[8,384], index: 3, kind: output, shape index: {}]
  %s4 = sld [smem:[#allocation0]]
  $region38: #{_fused_shared_linear.1} parent=0
    _
  %s6 = ssub.s32 1, %s4
  %s7 = scalar_select 0, %s6, %s4
  $region1: #{_fused_shared_linear.1} parent=0
    #allocation3 [shape = 'u8[4096]{0}', space=vmem, size = 0x1000, scoped, tag = 'input window, operand 0, single buffered']
    #allocation4 [shape = 's32[1]{0}', space=sflag, size = 0x4, scoped, tag = 'scoped memory for _fused_shared_linear.1']
    #allocation5 [shape = 's32[1]{0}', space=sflag, size = 0x4, scoped, tag = 'scoped memory for _fused_shared_linear.1']
    #allocation6 [shape = 'u8[196608]{0}', space=vmem, size = 0x30000, scoped, tag = 'input window, operand 1, single buffered']
    #allocation7 [shape = 's32[1]{0}', space=sflag, size = 0x4, scoped, tag = 'scoped memory for _fused_shared_linear.1']
    #allocation8 [shape = 'u8[12288]{0}', space=vmem, size = 0x3000, scoped, tag = 'output window, operand 0, single buffered']
    %8 = vsyncpa [#allocation4], 0
    %9 = vsyncpa [#allocation7], 0
    %10 = vsyncpa [#allocation5], 0
    // Predicated region
    $region2: #{_fused_shared_linear.1} parent=1 // pred_check
      _
    $region3: #{_fused_shared_linear.1} parent=1 // pred_check_branch
      %12 = sbr.rel (0) target = $region5
    $region4: #{_fused_shared_linear.1} parent=1 // pred_region
      %s14 = ssub.s32 128, 128
      %15 = vsyncadd [#allocation4], %s14
      %s17 = sshll.u32 [#allocation3], 4
      %s18 = int_to_ptr.vmem [resolvable:$true] %s17
      %20 = dma.hbm_to_vmem [thread:$0]  %s0, 128, %s18, [#allocation4]
    $region5: #{_fused_shared_linear.1} parent=1 // pred_fallthru
      _
    // Predicated region
    $region6: #{_fused_shared_linear.1} parent=1 // pred_check
      _
    $region7: #{_fused_shared_linear.1} parent=1 // pred_check_branch
      %22 = sbr.rel (0) target = $region9
    $region8: #{_fused_shared_linear.1} parent=1 // pred_region
      %s24 = ssub.s32 6144, 6144
      %25 = vsyncadd [#allocation7], %s24
      %s26 = sshll.u32 [#allocation6], 4
      %s27 = int_to_ptr.vmem [resolvable:$true] %s26
      %32 = dma.hbm_to_vmem [thread:$0]  %s1, 6144, %s27, [#allocation7], 384, 384, 24
    $region9: #{_fused_shared_linear.1} parent=1 // pred_fallthru
      _
    // Predicated region
    $region10: #{_fused_shared_linear.1} parent=1 // pred_check
      _
    $region11: #{_fused_shared_linear.1} parent=1 // pred_check_branch
      %34 = sbr.rel (0) target = $region13
    $region12: #{_fused_shared_linear.1} parent=1 // pred_region
      _
    $region13: #{_fused_shared_linear.1} parent=1 // pred_fallthru
      _
    // Predicated region
    $region14: #{_fused_shared_linear.1} parent=1 // pred_check
      _
    $region15: #{_fused_shared_linear.1} parent=1 // pred_check_branch
      %36 = sbr.rel (0) target = $region17
    $region16: #{_fused_shared_linear.1} parent=1 // pred_region
      %37 = dma.done [#allocation4], 128
    $region17: #{_fused_shared_linear.1} parent=1 // pred_fallthru
      _
    // Predicated region
    $region18: #{_fused_shared_linear.1} parent=1 // pred_check
      _
    $region19: #{_fused_shared_linear.1} parent=1 // pred_check_branch
      %39 = sbr.rel (0) target = $region21
    $region20: #{_fused_shared_linear.1} parent=1 // pred_region
      %40 = dma.done [#allocation7], 6144
    $region21: #{_fused_shared_linear.1} parent=1 // pred_fallthru
      _
    %p41 = scmp.eq.s32.totalorder 0, 0
    // Predicated region
    $region22: #{_fused_shared_linear.1} parent=1 // pred_check
      %p42 = pneg %p41
    $region23: #{_fused_shared_linear.1} parent=1 // pred_check_branch
      %44 = sbr.rel (%p42) target = $region25
    $region24: #{_fused_shared_linear.1} parent=1 // pred_region
      %v45 = vld [vmem:[%s2] sm:$0x7]
      %v47 = vlaneseq
      %v48 = vshrl.u32 %v47, 7
      %v49 = vsub.s32 0, %v48
      %v50 = vrot.slane %v45, %v49
      %v51 = vlaneseq
      %v52 = vshrl.u32 %v51, 7
      %v53 = vsub.s32 1, %v52
      %v54 = vrot.slane %v45, %v53
      %v55 = vlaneseq
      %v56 = vshrl.u32 %v55, 7
      %v57 = vsub.s32 2, %v56
      %v58 = vrot.slane %v45, %v57
      %62 = vst [vmem:[#allocation2] sm:$0xff] %v50
      %63 = vst [vmem:[#allocation2 + $0x8] sm:$0xff] %v54
      %64 = vst [vmem:[#allocation2 + $0x10] sm:$0xff] %v58
    $region25: #{_fused_shared_linear.1} parent=1 // pred_fallthru
      _
    %v65 = vld [vmem:[#allocation2] sm:$0xff]
    %v66 = vld [vmem:[#allocation2 + $0x8] sm:$0xff]
    %v67 = vld [vmem:[#allocation2 + $0x10] sm:$0xff]
    %v68 = vld [vmem:[#allocation3] sm:$0xff]
    %v69 = vld [vmem:[#allocation6] sm:$0xff]
    %v70 = vld [vmem:[#allocation6 + $0x8] sm:$0xff]
    %v71 = vld [vmem:[#allocation6 + $0x10] sm:$0xff]
    %v72 = vld [vmem:[#allocation6 + $0x18] sm:$0xff]
    %v73 = vld [vmem:[#allocation6 + $0x20] sm:$0xff]
    %v74 = vld [vmem:[#allocation6 + $0x28] sm:$0xff]
    %v75 = vld [vmem:[#allocation6 + $0x30] sm:$0xff]
    %v76 = vld [vmem:[#allocation6 + $0x38] sm:$0xff]
    %v77 = vld [vmem:[#allocation6 + $0x40] sm:$0xff]
    %v78 = vld [vmem:[#allocation6 + $0x48] sm:$0xff]
    %v79 = vld [vmem:[#allocation6 + $0x50] sm:$0xff]
    %v80 = vld [vmem:[#allocation6 + $0x58] sm:$0xff]
    %v81 = vld [vmem:[#allocation6 + $0x60] sm:$0xff]
    %v82 = vld [vmem:[#allocation6 + $0x68] sm:$0xff]
    %v83 = vld [vmem:[#allocation6 + $0x70] sm:$0xff]
    %v84 = vld [vmem:[#allocation6 + $0x78] sm:$0xff]
    %v85 = vld [vmem:[#allocation6 + $0x80] sm:$0xff]
    %v86 = vld [vmem:[#allocation6 + $0x88] sm:$0xff]
    %v87 = vld [vmem:[#allocation6 + $0x90] sm:$0xff]
    %v88 = vld [vmem:[#allocation6 + $0x98] sm:$0xff]
    %v89 = vld [vmem:[#allocation6 + $0xa0] sm:$0xff]
    %v90 = vld [vmem:[#allocation6 + $0xa8] sm:$0xff]
    %v91 = vld [vmem:[#allocation6 + $0xb0] sm:$0xff]
    %v92 = vld [vmem:[#allocation6 + $0xb8] sm:$0xff]
    %v93 = vld [vmem:[#allocation6 + $0xc0] sm:$0xff]
    %v94 = vld [vmem:[#allocation6 + $0xc8] sm:$0xff]
    %v95 = vld [vmem:[#allocation6 + $0xd0] sm:$0xff]
    %v96 = vld [vmem:[#allocation6 + $0xd8] sm:$0xff]
    %v97 = vld [vmem:[#allocation6 + $0xe0] sm:$0xff]
    %v98 = vld [vmem:[#allocation6 + $0xe8] sm:$0xff]
    %v99 = vld [vmem:[#allocation6 + $0xf0] sm:$0xff]
    %v100 = vld [vmem:[#allocation6 + $0xf8] sm:$0xff]
    %v101 = vld [vmem:[#allocation6 + $0x100] sm:$0xff]
    %v102 = vld [vmem:[#allocation6 + $0x108] sm:$0xff]
    %v103 = vld [vmem:[#allocation6 + $0x110] sm:$0xff]
    %v104 = vld [vmem:[#allocation6 + $0x118] sm:$0xff]
    %v105 = vld [vmem:[#allocation6 + $0x120] sm:$0xff]
    %v106 = vld [vmem:[#allocation6 + $0x128] sm:$0xff]
    %v107 = vld [vmem:[#allocation6 + $0x130] sm:$0xff]
    %v108 = vld [vmem:[#allocation6 + $0x138] sm:$0xff]
    %v109 = vld [vmem:[#allocation6 + $0x140] sm:$0xff]
    %v110 = vld [vmem:[#allocation6 + $0x148] sm:$0xff]
    %v111 = vld [vmem:[#allocation6 + $0x150] sm:$0xff]
    %v112 = vld [vmem:[#allocation6 + $0x158] sm:$0xff]
    %v113 = vld [vmem:[#allocation6 + $0x160] sm:$0xff]
    %v114 = vld [vmem:[#allocation6 + $0x168] sm:$0xff]
    %v115 = vld [vmem:[#allocation6 + $0x170] sm:$0xff]
    %v116 = vld [vmem:[#allocation6 + $0x178] sm:$0xff]
    %117 = vmatprep.subr.mxu0 %v115
    %118 = vmatpush1.msra.mxu0 %v114
    %119 = vmatprep.subr.mxu0 %v112
    %120 = vmatpush1.msra.mxu0 %v111
    %121 = vmatprep.subr.mxu0 %v109
    %122 = vmatpush1.msra.mxu0 %v108
    %123 = vmatprep.subr.mxu0 %v106
    %124 = vmatpush1.msra.mxu0 %v105
    %125 = vmatprep.subr.mxu0 %v103
    %126 = vmatpush1.msra.mxu0 %v102
    %127 = vmatprep.subr.mxu0 %v100
    %128 = vmatpush1.msra.mxu0 %v99
    %129 = vmatprep.subr.mxu0 %v97
    %130 = vmatpush1.msra.mxu0 %v96
    %131 = vmatprep.subr.mxu0 %v94
    %132 = vmatpush1.msra.mxu0 %v93
    %133 = vmatprep.subr.mxu0 %v91
    %134 = vmatpush1.msra.mxu0 %v90
    %135 = vmatprep.subr.mxu0 %v88
    %136 = vmatpush1.msra.mxu0 %v87
    %137 = vmatprep.subr.mxu0 %v85
    %138 = vmatpush1.msra.mxu0 %v84
    %139 = vmatprep.subr.mxu0 %v82
    %140 = vmatpush1.msra.mxu0 %v81
    %141 = vmatprep.subr.mxu0 %v79
    %142 = vmatpush1.msra.mxu0 %v78
    %143 = vmatprep.subr.mxu0 %v76
    %144 = vmatpush1.msra.mxu0 %v75
    %145 = vmatprep.subr.mxu0 %v73
    %146 = vmatpush1.msra.mxu0 %v72
    %147 = vmatprep.subr.mxu0 %v70
    %148 = vmatpush1.msra.mxu0 %v69
    %149 = vmatprep.subr.mxu0 0.0
    %150 = vmatpush2.msra.mxu0 0.0
    %151 = vmatprep.subr.mxu0 0.0
    %152 = vmatpush2.msra.mxu0 0.0
    %153 = vmatprep.subr.mxu0 0.0
    %154 = vmatpush2.msra.mxu0 0.0
    %155 = vmatprep.subr.mxu0 0.0
    %156 = vmatpush2.msra.mxu0 0.0
    %157 = vmatprep.subr.mxu0 0.0
    %158 = vmatpush2.msra.mxu0 0.0
    %159 = vmatprep.subr.mxu0 0.0
    %160 = vmatpush2.msra.mxu0 0.0
    %161 = vmatprep.subr.mxu0 0.0
    %162 = vmatpush2.msra.mxu0 0.0
    %163 = vmatprep.subr.mxu0 0.0
    %164 = vmatpush2.msra.mxu0 0.0
    %165 = vmatprep.subr.mxu0 0.0
    %166 = vmatpush2.msra.mxu0 0.0
    %167 = vmatprep.subr.mxu0 0.0
    %168 = vmatpush2.msra.mxu0 0.0
    %169 = vmatprep.subr.mxu0 0.0
    %170 = vmatpush2.msra.mxu0 0.0
    %171 = vmatprep.subr.mxu0 0.0
    %172 = vmatpush2.msra.mxu0 0.0
    %173 = vmatprep.subr.mxu0 0.0
    %174 = vmatpush2.msra.mxu0 0.0
    %175 = vmatprep.subr.mxu0 0.0
    %176 = vmatpush2.msra.mxu0 0.0
    %177 = vmatprep.subr.mxu0 0.0
    %178 = vmatpush2.msra.mxu0 0.0
    %179 = vmatprep.subr.mxu0 0.0
    %180 = vmatpush2.msra.mxu0 0.0
    %181 = vmatprep.mubr.f32.mxu0 0.0
    %182 = vmatmul.mubr.f32.gmra.mxu0 %v68
    %v183 = vpop.f32.mrf.mxu0
    %v184 = vadd.f32 0.0, %v183
    %v185 = vpop.f32.mrf.mxu0
    %v186 = vadd.f32 0.0, %v185
    %187 = vdwg.mxu0
    %188 = vmatprep.subr.mxu0 0.0
    %189 = vmatpush1.msra.mxu0 %v116
    %190 = vmatprep.subr.mxu0 0.0
    %191 = vmatpush1.msra.mxu0 %v113
    %192 = vmatprep.subr.mxu0 0.0
    %193 = vmatpush1.msra.mxu0 %v110
    %194 = vmatprep.subr.mxu0 0.0
    %195 = vmatpush1.msra.mxu0 %v107
    %196 = vmatprep.subr.mxu0 0.0
    %197 = vmatpush1.msra.mxu0 %v104
    %198 = vmatprep.subr.mxu0 0.0
    %199 = vmatpush1.msra.mxu0 %v101
    %200 = vmatprep.subr.mxu0 0.0
    %201 = vmatpush1.msra.mxu0 %v98
    %202 = vmatprep.subr.mxu0 0.0
    %203 = vmatpush1.msra.mxu0 %v95
    %204 = vmatprep.subr.mxu0 0.0
    %205 = vmatpush1.msra.mxu0 %v92
    %206 = vmatprep.subr.mxu0 0.0
    %207 = vmatpush1.msra.mxu0 %v89
    %208 = vmatprep.subr.mxu0 0.0
    %209 = vmatpush1.msra.mxu0 %v86
    %210 = vmatprep.subr.mxu0 0.0
    %211 = vmatpush1.msra.mxu0 %v83
    %212 = vmatprep.subr.mxu0 0.0
    %213 = vmatpush1.msra.mxu0 %v80
    %214 = vmatprep.subr.mxu0 0.0
    %215 = vmatpush1.msra.mxu0 %v77
    %216 = vmatprep.subr.mxu0 0.0
    %217 = vmatpush1.msra.mxu0 %v74
    %218 = vmatprep.subr.mxu0 0.0
    %219 = vmatpush1.msra.mxu0 %v71
    %220 = vmatprep.subr.mxu0 0.0
    %221 = vmatpush2.msra.mxu0 0.0
    %222 = vmatprep.subr.mxu0 0.0
    %223 = vmatpush2.msra.mxu0 0.0
    %224 = vmatprep.subr.mxu0 0.0
    %225 = vmatpush2.msra.mxu0 0.0
    %226 = vmatprep.subr.mxu0 0.0
    %227 = vmatpush2.msra.mxu0 0.0
    %228 = vmatprep.subr.mxu0 0.0
    %229 = vmatpush2.msra.mxu0 0.0
    %230 = vmatprep.subr.mxu0 0.0
    %231 = vmatpush2.msra.mxu0 0.0
    %232 = vmatprep.subr.mxu0 0.0
    %233 = vmatpush2.msra.mxu0 0.0
    %234 = vmatprep.subr.mxu0 0.0
    %235 = vmatpush2.msra.mxu0 0.0
    %236 = vmatprep.subr.mxu0 0.0
    %237 = vmatpush2.msra.mxu0 0.0
    %238 = vmatprep.subr.mxu0 0.0
    %239 = vmatpush2.msra.mxu0 0.0
    %240 = vmatprep.subr.mxu0 0.0
    %241 = vmatpush2.msra.mxu0 0.0
    %242 = vmatprep.subr.mxu0 0.0
    %243 = vmatpush2.msra.mxu0 0.0
    %244 = vmatprep.subr.mxu0 0.0
    %245 = vmatpush2.msra.mxu0 0.0
    %246 = vmatprep.subr.mxu0 0.0
    %247 = vmatpush2.msra.mxu0 0.0
    %248 = vmatprep.subr.mxu0 0.0
    %249 = vmatpush2.msra.mxu0 0.0
    %250 = vmatprep.subr.mxu0 0.0
    %251 = vmatpush2.msra.mxu0 0.0
    %252 = vmatprep.mubr.f32.mxu0 0.0
    %253 = vmatmul.mubr.f32.gmra.mxu0 %v68
    %v254 = vpop.f32.mrf.mxu0
    %v255 = vadd.f32 0.0, %v254
    %v256 = vpop.f32.mrf.mxu0
    %257 = vdwg.mxu0
    %v258 = vadd.f32 %v65, %v184
    %v259 = vadd.f32 %v66, %v186
    %v260 = vadd.f32 %v67, %v255
    %261 = vst [vmem:[#allocation2] sm:$0xff] %v258
    %262 = vst [vmem:[#allocation2 + $0x8] sm:$0xff] %v259
    %263 = vst [vmem:[#allocation2 + $0x10] sm:$0xff] %v260
    // Predicated region
    $region26: #{_fused_shared_linear.1} parent=1 // pred_check
      %p264 = pneg %p41
    $region27: #{_fused_shared_linear.1} parent=1 // pred_check_branch
      %266 = sbr.rel (%p264) target = $region29
    $region28: #{_fused_shared_linear.1} parent=1 // pred_region
      %v267 = vld [vmem:[#allocation2] sm:$0xff]
      %v268 = vld [vmem:[#allocation2 + $0x8] sm:$0xff]
      %v269 = vld [vmem:[#allocation2 + $0x10] sm:$0xff]
      %270 = vst [vmem:[#allocation8] sm:$0xff] %v267
      %271 = vst [vmem:[#allocation8 + $0x8] sm:$0xff] %v268
      %272 = vst [vmem:[#allocation8 + $0x10] sm:$0xff] %v269
    $region29: #{_fused_shared_linear.1} parent=1 // pred_fallthru
      _
    // Predicated region
    $region30: #{_fused_shared_linear.1} parent=1 // pred_check
      _
    $region31: #{_fused_shared_linear.1} parent=1 // pred_check_branch
      %274 = sbr.rel (0) target = $region33
    $region32: #{_fused_shared_linear.1} parent=1 // pred_region
      %s276 = ssub.s32 384, 384
      %277 = vsyncadd [#allocation5], %s276
      %s279 = sshll.u32 [#allocation8], 4
      %s280 = int_to_ptr.vmem [resolvable:$true] %s279
      %282 = dma.vmem_to_hbm [thread:$0]  %s280, 384, %s3, [#allocation5]
    $region33: #{_fused_shared_linear.1} parent=1 // pred_fallthru
      _
    // Predicated region
    $region34: #{_fused_shared_linear.1} parent=1 // pred_check
      _
    $region35: #{_fused_shared_linear.1} parent=1 // pred_check_branch
      %284 = sbr.rel (0) target = $region37
    $region36: #{_fused_shared_linear.1} parent=1 // pred_region
      %285 = dma.done [#allocation5], 384
    $region37: #{_fused_shared_linear.1} parent=1 // pred_fallthru
      _
    %286 = vsyncpa [#allocation4], 1
    %287 = vsyncpa [#allocation7], 1
    %288 = vsyncpa [#allocation5], 1

</llo_original>
